<compile_context>
chip_gen: v7x
topology: tpu7x:2x2x1
jax: 0.10.0
libtpu: 0.0.40
codegen_flags: <defaults>
</compile_context>

<pallas_src>
import functools

import jax
import jax.numpy as jnp
from jax.experimental import pallas as pl
from jax.experimental.pallas import tpu as pltpu


def _round_up(x, m):
    return ((x + m - 1) // m) * m


def _device_profile():
    """Returns (activation dtype, max batch-tile lanes, vmem_limit_bytes)."""
    try:
        kind = jax.devices()[0].device_kind.lower()
    except Exception:
        kind = ""
    if ("v6" in kind) or ("v7" in kind) or ("7x" in kind):
        act_dtype = jnp.bfloat16          # bf16 EUP/VPU -> ~2x tanh throughput
    else:
        act_dtype = jnp.float32           # v5e & older: no bf16 VPU/EUP
    if ("v7" in kind) or ("7x" in kind):
        # v7x: 64 MiB physical VMEM -> smaller tile cap + scoped limit.
        return act_dtype, 32 * 1024, 32 * 1024 * 1024
    # v5e / v6e: 128 MiB physical VMEM.
    return act_dtype, 64 * 1024, 64 * 1024 * 1024


def _mlp_kernel(x_ref, w1_ref, b1_ref, w2_ref, b2_ref, w3_ref, b3_ref, o_ref,
                *, act_dtype):
    # Transposed, lane-dense layout: batch sits on the 128-lane (last) axis.
    #   x_ref : (D_in, TILE_B) f32    w1_ref: (H, D_in)   b1_ref: (H, 1)
    #   w2_ref: (H, H)                b2_ref: (H, 1)
    #   w3_ref: (1, H)                b3_ref: (1, 1) f32
    #   o_ref : (1, TILE_B) f32
    x = x_ref[...].astype(act_dtype)
    w1 = w1_ref[...]
    d_in = x.shape[0]

    # Layer 1: K = D_in (typically 1) -> broadcast outer product on the VPU;
    # the MXU would be wasted on a K=1 contraction.
    acc = w1[:, 0:1] * x[0:1, :]                         # (H, TILE_B)
    for k in range(1, d_in):                             # static, tiny loop
        acc = acc + w1[:, k:k + 1] * x[k:k + 1, :]
    h1 = jnp.tanh(acc + b1_ref[...])                     # (H, TILE_B), act_dtype

    # Layer 2: 10x10 contraction on the MXU, f32 accumulation, tanh in act_dtype.
    z2 = jnp.dot(w2_ref[...], h1, preferred_element_type=jnp.float32)
    h2 = jnp.tanh((z2 + b2_ref[...]).astype(act_dtype))  # (H, TILE_B)

    # Layer 3: (1, H) @ (H, TILE_B) on the (otherwise idle) MXU.
    z3 = jnp.dot(w3_ref[...], h2, preferred_element_type=jnp.float32)
    o_ref[...] = z3 + b3_ref[...]                        # (1, TILE_B) f32


def regression_forward(x, w1, b1, w2, b2, w3, b3, *, tile_b=None,
                       allow_xla_fallback=False):
    """Forward pass of the 3-layer regression MLP.

    PyTorch nn.Linear layouts:
      x : (B, D_in)
      w1: (H, D_in)  b1: (H,)
      w2: (H, H)     b2: (H,)
      w3: (1, H)     b3: (1,)
    Returns (B, 1) float32.
    """
    batch, d_in = x.shape
    hidden = w1.shape[0]

    if allow_xla_fallback and batch < 4096:
        # <1 KFLOP/row: kernel launch + 7 input DMAs can never be recovered.
        h1 = jnp.tanh(x @ w1.T + b1)
        h2 = jnp.tanh(h1 @ w2.T + b2)
        return (h2 @ w3.T + b3).astype(jnp.float32)

    act_dtype, max_tile, vmem_limit = _device_profile()

    if tile_b is None:
        tile_b = min(max_tile, _round_up(batch, 128))
        # Keep >= 2 grid steps for non-tiny batches so the "parallel" axis can
        # shard across v7x's two TensorCores (negligible cost on v5e/v6e).
        if batch > 256 and pl.cdiv(batch, tile_b) < 2:
            tile_b = _round_up(pl.cdiv(batch, 2), 128)
    tile_b = int(tile_b)
    grid = (int(pl.cdiv(batch, tile_b)),)

    # Transposed input: batch on the lane (last) axis.  For D_in == 1 this is a
    # free reshape; no padded HBM copy of x is made (Pallas masks the ragged
    # boundary tile, and nothing in the kernel contracts over the batch axis).
    x_t = x.astype(jnp.float32).T                        # (D_in, B)

    w1c = w1.astype(act_dtype)
    b1c = b1.reshape(hidden, 1).astype(act_dtype)
    w2c = w2.astype(act_dtype)
    b2c = b2.reshape(hidden, 1).astype(act_dtype)
    w3c = w3.reshape(1, hidden).astype(act_dtype)        # (1, H) row for the MXU
    b3c = b3.reshape(1, 1).astype(jnp.float32)

    const = lambda shape: pl.BlockSpec(shape, lambda i: (0, 0))  # resident in VMEM

    weight_bytes = 4 * (w1.size + b1.size + w2.size + b2.size + w3.size + b3.size)
    cost = pl.CostEstimate(
        flops=2 * batch * (d_in * hidden + hidden * hidden + hidden),
        transcendentals=2 * hidden * batch,
        bytes_accessed=4 * batch * (d_in + 1) + int(weight_bytes),
    )

    kernel = functools.partial(_mlp_kernel, act_dtype=act_dtype)

    out = pl.pallas_call(
        kernel,
        out_shape=jax.ShapeDtypeStruct((1, batch), jnp.float32),
        grid_spec=pltpu.PrefetchScalarGridSpec(
            num_scalar_prefetch=0,
            grid=grid,
            in_specs=[
                pl.BlockSpec((d_in, tile_b), lambda i: (0, i)),  # x tile
                const((hidden, d_in)),                           # w1 (resident)
                const((hidden, 1)),                              # b1
                const((hidden, hidden)),                         # w2
                const((hidden, 1)),                              # b2
                const((1, hidden)),                              # w3 (row)
                const((1, 1)),                                   # b3
            ],
            out_specs=pl.BlockSpec((1, tile_b), lambda i: (0, i)),
        ),
        compiler_params=pltpu.CompilerParams(
            dimension_semantics=("parallel",),
            vmem_limit_bytes=vmem_limit,
        ),
        cost_estimate=cost,
    )(x_t, w1c, b1c, w2c, b2c, w3c, b3c)

    return out.reshape(batch, 1)


def init_params(key, input_size, hidden=10, out=1):
    """PyTorch nn.Linear-style init: U(-1/sqrt(fan_in), 1/sqrt(fan_in))."""
    ks = jax.random.split(key, 6)

    def uniform(k, shape, fan_in):
        bound = 1.0 / jnp.sqrt(jnp.float32(fan_in))
        return jax.random.uniform(k, shape, jnp.float32, -bound, bound)

    w1 = uniform(ks[0], (hidden, input_size), input_size)
    b1 = uniform(ks[1], (hidden,), input_size)
    w2 = uniform(ks[2], (hidden, hidden), hidden)
    b2 = uniform(ks[3], (hidden,), hidden)
    w3 = uniform(ks[4], (out, hidden), hidden)
    b3 = uniform(ks[5], (out,), hidden)
    return w1, b1, w2, b2, w3, b3


def reference_forward(x, w1, b1, w2, b2, w3, b3):
    h1 = jnp.tanh(x @ w1.T + b1)
    h2 = jnp.tanh(h1 @ w2.T + b2)
    return h2 @ w3.T + b3


if __name__ == "__main__":
    key = jax.random.PRNGKey(0)
    input_size = 1  # lesson script regresses on scalar x = np.arange(n_samples)
    params = init_params(key, input_size)

    act_dtype, _, _ = _device_profile()
    tol = 5e-2 if act_dtype == jnp.bfloat16 else 1e-5  # bf16 tanh path is looser

    fwd = jax.jit(regression_forward)

    # Case 1: exactly the lesson's data — x = np.arange(n_samples) as a (B, 1) column.
    n_samples = 10
    x_small = jnp.arange(n_samples, dtype=jnp.float32).reshape(n_samples, input_size)
    out_small = jax.block_until_ready(fwd(x_small, *params))
    ref_small = reference_forward(x_small, *params)
    assert out_small.shape == (n_samples, 1)
    assert jnp.allclose(out_small, ref_small, atol=tol, rtol=tol), (
        float(jnp.max(jnp.abs(out_small - ref_small))))

    # Case 2: a larger ragged batch — exercises multi-step grid + masked tail tile.
    batch = 1000
    x_big = jax.random.normal(jax.random.PRNGKey(1), (batch, input_size),
                              jnp.float32) * 3.0
    out_big = jax.block_until_ready(fwd(x_big, *params))
    ref_big = reference_forward(x_big, *params)
    assert out_big.shape == (batch, 1)
    assert jnp.allclose(out_big, ref_big, atol=tol, rtol=tol), (
        float(jnp.max(jnp.abs(out_big - ref_big))))

    print("KERNEL_OK")
</pallas_src>

<mosaic_0001>
module attributes {stable_mosaic.version = 11 : i64} {
  func.func @_mlp_kernel(%arg0: i32, %arg1: memref<1x128xf32, #tpu.memory_space<vmem>>, %arg2: memref<10x1xf32, #tpu.memory_space<vmem>>, %arg3: memref<10x1xf32, #tpu.memory_space<vmem>>, %arg4: memref<10x10xf32, #tpu.memory_space<vmem>>, %arg5: memref<10x1xf32, #tpu.memory_space<vmem>>, %arg6: memref<1x10xf32, #tpu.memory_space<vmem>>, %arg7: memref<1x1xf32, #tpu.memory_space<vmem>>, %arg8: memref<1x128xf32, #tpu.memory_space<vmem>>) attributes {dimension_semantics = [#tpu.dimension_semantics<parallel>], iteration_bounds = array<i64: 1>, scalar_prefetch = 0 : i64, scratch_operands = 0 : i64, tpu.core_type = #tpu.core_type<tc>, window_params = [{transform_indices = @transform_0, window_bounds = array<i64: 1, 128>}, {pipeline_mode = #tpu.pipeline_mode<synchronous>, transform_indices = @transform_1, window_bounds = array<i64: 10, 1>}, {pipeline_mode = #tpu.pipeline_mode<synchronous>, transform_indices = @transform_2, window_bounds = array<i64: 10, 1>}, {pipeline_mode = #tpu.pipeline_mode<synchronous>, transform_indices = @transform_3, window_bounds = array<i64: 10, 10>}, {pipeline_mode = #tpu.pipeline_mode<synchronous>, transform_indices = @transform_4, window_bounds = array<i64: 10, 1>}, {pipeline_mode = #tpu.pipeline_mode<synchronous>, transform_indices = @transform_5, window_bounds = array<i64: 1, 10>}, {pipeline_mode = #tpu.pipeline_mode<synchronous>, transform_indices = @transform_6, window_bounds = array<i64: 1, 1>}, {transform_indices = @transform_7, window_bounds = array<i64: 1, 128>}]} {
    %c0 = arith.constant 0 : index
    %c0_0 = arith.constant 0 : index
    %0 = vector.load %arg1[%c0, %c0_0] : memref<1x128xf32, #tpu.memory_space<vmem>>, vector<1x128xf32>
    %c0_1 = arith.constant 0 : index
    %c0_2 = arith.constant 0 : index
    %1 = vector.load %arg2[%c0_1, %c0_2] : memref<10x1xf32, #tpu.memory_space<vmem>>, vector<10x1xf32>
    %2 = vector.broadcast %1 : vector<10x1xf32> to vector<10x128xf32>
    %3 = vector.broadcast %0 : vector<1x128xf32> to vector<10x128xf32>
    %4 = arith.mulf %2, %3 : vector<10x128xf32>
    %c0_3 = arith.constant 0 : index
    %c0_4 = arith.constant 0 : index
    %5 = vector.load %arg3[%c0_3, %c0_4] : memref<10x1xf32, #tpu.memory_space<vmem>>, vector<10x1xf32>
    %6 = vector.broadcast %5 : vector<10x1xf32> to vector<10x128xf32>
    %7 = arith.addf %4, %6 : vector<10x128xf32>
    %8 = math.tanh %7 : vector<10x128xf32>
    %c0_5 = arith.constant 0 : index
    %c0_6 = arith.constant 0 : index
    %9 = vector.load %arg4[%c0_5, %c0_6] : memref<10x10xf32, #tpu.memory_space<vmem>>, vector<10x10xf32>
    %cst = arith.constant dense<0.000000e+00> : vector<10x128xf32>
    %10 = tpu.matmul %9, %8, %cst {dimension_numbers = #tpu.dot_dimension_numbers<[1], [0], [0], [1], [0, 0, 1, 1], [], []>} : vector<10x10xf32>, vector<10x128xf32>, vector<10x128xf32> -> vector<10x128xf32>
    %c0_7 = arith.constant 0 : index
    %c0_8 = arith.constant 0 : index
    %11 = vector.load %arg5[%c0_7, %c0_8] : memref<10x1xf32, #tpu.memory_space<vmem>>, vector<10x1xf32>
    %12 = vector.broadcast %11 : vector<10x1xf32> to vector<10x128xf32>
    %13 = arith.addf %10, %12 : vector<10x128xf32>
    %14 = math.tanh %13 : vector<10x128xf32>
    %c0_9 = arith.constant 0 : index
    %c0_10 = arith.constant 0 : index
    %15 = vector.load %arg6[%c0_9, %c0_10] : memref<1x10xf32, #tpu.memory_space<vmem>>, vector<1x10xf32>
    %cst_11 = arith.constant dense<0.000000e+00> : vector<1x128xf32>
    %16 = tpu.matmul %15, %14, %cst_11 {dimension_numbers = #tpu.dot_dimension_numbers<[1], [0], [0], [1], [0, 0, 1, 1], [], []>} : vector<1x10xf32>, vector<10x128xf32>, vector<1x128xf32> -> vector<1x128xf32>
    %c0_12 = arith.constant 0 : index
    %c0_13 = arith.constant 0 : index
    %17 = vector.load %arg7[%c0_12, %c0_13] : memref<1x1xf32, #tpu.memory_space<vmem>>, vector<1x1xf32>
    %18 = vector.broadcast %17 : vector<1x1xf32> to vector<1x128xf32>
    %19 = arith.addf %16, %18 : vector<1x128xf32>
    %c0_14 = arith.constant 0 : index
    %c0_15 = arith.constant 0 : index
    %20 = vector.load %arg8[%c0_14, %c0_15] : memref<1x128xf32, #tpu.memory_space<vmem>>, vector<1x128xf32>
    tpu.vector_store %arg8[%c0_14, %c0_15], %19 {strides = array<i32>} : memref<1x128xf32, #tpu.memory_space<vmem>>, vector<1x128xf32>,
    return
  }
  func.func @transform_0(%arg0: i32) -> (i32, i32) {
    %c0_i32 = arith.constant 0 : i32
    %c0_i32_0 = arith.constant 0 : i32
    return %c0_i32, %arg0 : i32, i32
  }
  func.func @transform_1(%arg0: i32) -> (i32, i32) {
    %c0_i32 = arith.constant 0 : i32
    %c0_i32_0 = arith.constant 0 : i32
    %c0_i32_1 = arith.constant 0 : i32
    return %c0_i32, %c0_i32_0 : i32, i32
  }
  func.func @transform_2(%arg0: i32) -> (i32, i32) {
    %c0_i32 = arith.constant 0 : i32
    %c0_i32_0 = arith.constant 0 : i32
    %c0_i32_1 = arith.constant 0 : i32
    return %c0_i32, %c0_i32_0 : i32, i32
  }
  func.func @transform_3(%arg0: i32) -> (i32, i32) {
    %c0_i32 = arith.constant 0 : i32
    %c0_i32_0 = arith.constant 0 : i32
    %c0_i32_1 = arith.constant 0 : i32
    return %c0_i32, %c0_i32_0 : i32, i32
  }
  func.func @transform_4(%arg0: i32) -> (i32, i32) {
    %c0_i32 = arith.constant 0 : i32
    %c0_i32_0 = arith.constant 0 : i32
    %c0_i32_1 = arith.constant 0 : i32
    return %c0_i32, %c0_i32_0 : i32, i32
  }
  func.func @transform_5(%arg0: i32) -> (i32, i32) {
    %c0_i32 = arith.constant 0 : i32
    %c0_i32_0 = arith.constant 0 : i32
    %c0_i32_1 = arith.constant 0 : i32
    return %c0_i32, %c0_i32_0 : i32, i32
  }
  func.func @transform_6(%arg0: i32) -> (i32, i32) {
    %c0_i32 = arith.constant 0 : i32
    %c0_i32_0 = arith.constant 0 : i32
    %c0_i32_1 = arith.constant 0 : i32
    return %c0_i32, %c0_i32_0 : i32, i32
  }
  func.func @transform_7(%arg0: i32) -> (i32, i32) {
    %c0_i32 = arith.constant 0 : i32
    %c0_i32_0 = arith.constant 0 : i32
    return %c0_i32, %arg0 : i32, i32
  }
}

</mosaic_0001>

<llo_original>
// kernel: regression_forward.1
$region0: #{regression_forward.1}
  #allocation0 [shape = 'u32[]', space=smem, size = 0x4, offset = 0x4, fixed_abs, tag = 'smem constant byte address 0x4 - core index']
  #allocation1 [shape = 'u32[144,128]{1,0:T(1,128)}', space=vmem, size = 0x12000, scoped, tag = 'internal scratch']
  #allocation2 [shape = 'f32[1,1]{1,0:T(1,128)S(1)}', space=vmem, size = 0x200, scoped, tag = 'scoped memory for regression_forward.1']
  %s0 = inlined_call_operand.hbm [shape: f32[1,10], index: 0, kind: input, shape index: {}]
  %s1 = inlined_call_operand.hbm [shape: f32[10,1], index: 1, kind: input, shape index: {}]
  %s2 = inlined_call_operand.hbm [shape: f32[10,1], index: 2, kind: input, shape index: {}]
  %s3 = inlined_call_operand.hbm [shape: f32[10,10], index: 3, kind: input, shape index: {}]
  %s4 = inlined_call_operand.hbm [shape: f32[10,1], index: 4, kind: input, shape index: {}]
  %s5 = inlined_call_operand.hbm [shape: f32[1,10], index: 5, kind: input, shape index: {}]
  %s6 = inlined_call_operand.<no memory space> [shape: f32[1,1], index: 6, kind: input, shape index: {}]
  %s7 = inlined_call_operand.hbm [shape: f32[1,10], index: 7, kind: output, shape index: {}]
  %s8 = sld [smem:[#allocation0]]
  $region62: #{regression_forward.1} parent=0
    _
  %s10 = ssub.s32 1, %s8
  %s11 = scalar_select 0, %s10, %s8
  %v12 = vstv %s6
  %13 = vst [vmem:[#allocation2] sm:$0x1] %v12
  $region1: #{regression_forward.1} parent=0
    #allocation3 [shape = 'u8[512]{0}', space=vmem, size = 0x400, scoped, tag = 'input window, operand 0, single buffered']
    #allocation4 [shape = 's32[1]{0}', space=sflag, size = 0x4, scoped, tag = 'scoped memory for regression_forward.1']
    #allocation5 [shape = 's32[1]{0}', space=sflag, size = 0x4, scoped, tag = 'scoped memory for regression_forward.1']
    #allocation6 [shape = 'u8[8192]{0}', space=vmem, size = 0x2000, scoped, tag = 'input window, operand 1, single buffered']
    #allocation7 [shape = 's32[1]{0}', space=sflag, size = 0x4, scoped, tag = 'scoped memory for regression_forward.1']
    #allocation8 [shape = 'u8[8192]{0}', space=vmem, size = 0x2000, scoped, tag = 'input window, operand 2, single buffered']
    #allocation9 [shape = 'u8[8192]{0}', space=vmem, size = 0x2000, scoped, tag = 'input window, operand 3, single buffered']
    #allocation10 [shape = 's32[1]{0}', space=sflag, size = 0x4, scoped, tag = 'scoped memory for regression_forward.1']
    #allocation11 [shape = 'u8[8192]{0}', space=vmem, size = 0x2000, scoped, tag = 'input window, operand 4, single buffered']
    #allocation12 [shape = 'u8[512]{0}', space=vmem, size = 0x400, scoped, tag = 'input window, operand 5, single buffered']
    #allocation13 [shape = 's32[1]{0}', space=sflag, size = 0x4, scoped, tag = 'scoped memory for regression_forward.1']
    #allocation14 [shape = 'u8[512]{0}', space=vmem, size = 0x400, scoped, tag = 'output window, operand 0, single buffered']
    %14 = vsyncpa [#allocation4], 0
    %15 = vsyncpa [#allocation7], 0
    %16 = vsyncpa [#allocation10], 0
    %17 = vsyncpa [#allocation13], 0
    %18 = vsyncpa [#allocation5], 0
    // Predicated region
    $region2: #{regression_forward.1} parent=1 // pred_check
      _
    $region3: #{regression_forward.1} parent=1 // pred_check_branch
      %20 = sbr.rel (0) target = $region5
    $region4: #{regression_forward.1} parent=1 // pred_region
      %s22 = ssub.s32 16, 16
      %23 = vsyncadd [#allocation4], %s22
      %s25 = sshll.u32 [#allocation3], 4
      %s26 = int_to_ptr.vmem [resolvable:$true] %s25
      %28 = dma.hbm_to_vmem [thread:$0]  %s0, 16, %s26, [#allocation4]
    $region5: #{regression_forward.1} parent=1 // pred_fallthru
      _
    // Predicated region
    $region6: #{regression_forward.1} parent=1 // pred_check
      _
    $region7: #{regression_forward.1} parent=1 // pred_check_branch
      %30 = sbr.rel (0) target = $region9
    $region8: #{regression_forward.1} parent=1 // pred_region
      %s32 = ssub.s32 256, 256
      %33 = vsyncadd [#allocation7], %s32
      %s34 = sshll.u32 [#allocation6], 4
      %s35 = int_to_ptr.vmem [resolvable:$true] %s34
      %40 = dma.hbm_to_vmem [thread:$0]  %s1, 256, %s35, [#allocation7], 128, 128, 8
    $region9: #{regression_forward.1} parent=1 // pred_fallthru
      _
    // Predicated region
    $region10: #{regression_forward.1} parent=1 // pred_check
      _
    $region11: #{regression_forward.1} parent=1 // pred_check_branch
      %42 = sbr.rel (0) target = $region13
    $region12: #{regression_forward.1} parent=1 // pred_region
      %s44 = ssub.s32 256, 256
      %45 = vsyncadd [#allocation7], %s44
      %s46 = sshll.u32 [#allocation8], 4
      %s47 = int_to_ptr.vmem [resolvable:$true] %s46
      %52 = dma.hbm_to_vmem [thread:$0]  %s2, 256, %s47, [#allocation7], 128, 128, 8
    $region13: #{regression_forward.1} parent=1 // pred_fallthru
      _
    // Predicated region
    $region14: #{regression_forward.1} parent=1 // pred_check
      _
    $region15: #{regression_forward.1} parent=1 // pred_check_branch
      %54 = sbr.rel (0) target = $region17
    $region16: #{regression_forward.1} parent=1 // pred_region
      %s56 = ssub.s32 256, 256
      %57 = vsyncadd [#allocation10], %s56
      %s58 = sshll.u32 [#allocation9], 4
      %s59 = int_to_ptr.vmem [resolvable:$true] %s58
      %64 = dma.hbm_to_vmem [thread:$0]  %s3, 256, %s59, [#allocation10], 128, 128, 8
    $region17: #{regression_forward.1} parent=1 // pred_fallthru
      _
    // Predicated region
    $region18: #{regression_forward.1} parent=1 // pred_check
      _
    $region19: #{regression_forward.1} parent=1 // pred_check_branch
      %66 = sbr.rel (0) target = $region21
    $region20: #{regression_forward.1} parent=1 // pred_region
      %s68 = ssub.s32 256, 256
      %69 = vsyncadd [#allocation10], %s68
      %s70 = sshll.u32 [#allocation11], 4
      %s71 = int_to_ptr.vmem [resolvable:$true] %s70
      %76 = dma.hbm_to_vmem [thread:$0]  %s4, 256, %s71, [#allocation10], 128, 128, 8
    $region21: #{regression_forward.1} parent=1 // pred_fallthru
      _
    // Predicated region
    $region22: #{regression_forward.1} parent=1 // pred_check
      _
    $region23: #{regression_forward.1} parent=1 // pred_check_branch
      %78 = sbr.rel (0) target = $region25
    $region24: #{regression_forward.1} parent=1 // pred_region
      %s80 = ssub.s32 16, 16
      %81 = vsyncadd [#allocation13], %s80
      %s83 = sshll.u32 [#allocation12], 4
      %s84 = int_to_ptr.vmem [resolvable:$true] %s83
      %86 = dma.hbm_to_vmem [thread:$0]  %s5, 16, %s84, [#allocation13]
    $region25: #{regression_forward.1} parent=1 // pred_fallthru
      _
    // Predicated region
    $region26: #{regression_forward.1} parent=1 // pred_check
      _
    $region27: #{regression_forward.1} parent=1 // pred_check_branch
      %88 = sbr.rel (0) target = $region29
    $region28: #{regression_forward.1} parent=1 // pred_region
      _
    $region29: #{regression_forward.1} parent=1 // pred_fallthru
      _
    // Predicated region
    $region30: #{regression_forward.1} parent=1 // pred_check
      _
    $region31: #{regression_forward.1} parent=1 // pred_check_branch
      %90 = sbr.rel (0) target = $region33
    $region32: #{regression_forward.1} parent=1 // pred_region
      %91 = dma.done [#allocation4], 16
    $region33: #{regression_forward.1} parent=1 // pred_fallthru
      _
    // Predicated region
    $region34: #{regression_forward.1} parent=1 // pred_check
      _
    $region35: #{regression_forward.1} parent=1 // pred_check_branch
      %93 = sbr.rel (0) target = $region37
    $region36: #{regression_forward.1} parent=1 // pred_region
      %94 = dma.done [#allocation7], 256
    $region37: #{regression_forward.1} parent=1 // pred_fallthru
      _
    // Predicated region
    $region38: #{regression_forward.1} parent=1 // pred_check
      _
    $region39: #{regression_forward.1} parent=1 // pred_check_branch
      %96 = sbr.rel (0) target = $region41
    $region40: #{regression_forward.1} parent=1 // pred_region
      %97 = dma.done [#allocation7], 256
    $region41: #{regression_forward.1} parent=1 // pred_fallthru
      _
    // Predicated region
    $region42: #{regression_forward.1} parent=1 // pred_check
      _
    $region43: #{regression_forward.1} parent=1 // pred_check_branch
      %99 = sbr.rel (0) target = $region45
    $region44: #{regression_forward.1} parent=1 // pred_region
      %100 = dma.done [#allocation10], 256
    $region45: #{regression_forward.1} parent=1 // pred_fallthru
      _
    // Predicated region
    $region46: #{regression_forward.1} parent=1 // pred_check
      _
    $region47: #{regression_forward.1} parent=1 // pred_check_branch
      %102 = sbr.rel (0) target = $region49
    $region48: #{regression_forward.1} parent=1 // pred_region
      %103 = dma.done [#allocation10], 256
    $region49: #{regression_forward.1} parent=1 // pred_fallthru
      _
    // Predicated region
    $region50: #{regression_forward.1} parent=1 // pred_check
      _
    $region51: #{regression_forward.1} parent=1 // pred_check_branch
      %105 = sbr.rel (0) target = $region53
    $region52: #{regression_forward.1} parent=1 // pred_region
      %106 = dma.done [#allocation13], 16
    $region53: #{regression_forward.1} parent=1 // pred_fallthru
      _
    %v107 = vld [vmem:[#allocation3] sm:$0x1]
    %v108 = vld [vmem:[#allocation6] sm:$0xff]
    %v109 = vld [vmem:[#allocation6 + $0x8] sm:$0x3]
    %111 = vset.pattern.permute.xlu0 0
    %112 = vperm.xlu0 %111, %v108
    %v113 = vpop.permute.xlu0 %112
    %116 = vset.pattern.permute.xlu0 0
    %117 = vperm.xlu0 %116, %v109
    %v118 = vpop.permute.xlu0 %117
    %v121 = vlaneseq
    %v122 = vshrl.u32 %v121, 7
    %v123 = vsub.s32 0, %v122
    %v124 = vrot.slane %v107, %v123
    %v126 = vmul.f32 %v113, %v124
    %v127 = vmul.f32 %v118, %v124
    %v128 = vld [vmem:[#allocation8] sm:$0xff]
    %v129 = vld [vmem:[#allocation8 + $0x8] sm:$0x3]
    %131 = vset.pattern.permute.xlu0 0
    %132 = vperm.xlu0 %131, %v128
    %v133 = vpop.permute.xlu0 %132
    %136 = vset.pattern.permute.xlu0 0
    %137 = vperm.xlu0 %136, %v129
    %v138 = vpop.permute.xlu0 %137
    %v140 = vadd.f32 %v126, %v133
    %v141 = vadd.f32 %v127, %v138
    %v142 = vtanh.pop %v140
    %v143 = vtanh.pop %v141
    %v144 = vld [vmem:[#allocation9] sm:$0xff]
    %v145 = vld [vmem:[#allocation9 + $0x8] sm:$0x3]
    %v146 = vld [vmem:[#allocation11] sm:$0xff]
    %v147 = vld [vmem:[#allocation11 + $0x8] sm:$0x3]
    %149 = vset.pattern.permute.xlu0 0
    %150 = vperm.xlu0 %149, %v146
    %v151 = vpop.permute.xlu0 %150
    %154 = vset.pattern.permute.xlu0 0
    %155 = vperm.xlu0 %154, %v147
    %v156 = vpop.permute.xlu0 %155
    %vm158 = vcmask 80896
    %v160 = vsel %vm158, %v144, 0
    %v163 = vsel %vm158, %v145, 0
    %vm165 = vcmask 1041408
    %v167 = vsel %vm165, %v143, 0
    %169 = vmatprep.subr.mxu0 0.0
    %170 = vmatpush1.msra.mxu0 %v142
    %171 = vmatprep.subr.mxu0 0.0
    %172 = vmatpush1.msra.mxu0 %v167
    %173 = vmatprep.subr.mxu0 0.0
    %174 = vmatpush1.msra.mxu0 0.0
    %175 = vmatprep.subr.mxu0 0.0
    %176 = vmatpush1.msra.mxu0 0.0
    %177 = vmatprep.subr.mxu0 0.0
    %178 = vmatpush1.msra.mxu0 0.0
    %179 = vmatprep.subr.mxu0 0.0
    %180 = vmatpush1.msra.mxu0 0.0
    %181 = vmatprep.subr.mxu0 0.0
    %182 = vmatpush1.msra.mxu0 0.0
    %183 = vmatprep.subr.mxu0 0.0
    %184 = vmatpush1.msra.mxu0 0.0
    %185 = vmatprep.subr.mxu0 0.0
    %186 = vmatpush1.msra.mxu0 0.0
    %187 = vmatprep.subr.mxu0 0.0
    %188 = vmatpush1.msra.mxu0 0.0
    %189 = vmatprep.subr.mxu0 0.0
    %190 = vmatpush1.msra.mxu0 0.0
    %191 = vmatprep.subr.mxu0 0.0
    %192 = vmatpush1.msra.mxu0 0.0
    %193 = vmatprep.subr.mxu0 0.0
    %194 = vmatpush1.msra.mxu0 0.0
    %195 = vmatprep.subr.mxu0 0.0
    %196 = vmatpush1.msra.mxu0 0.0
    %197 = vmatprep.subr.mxu0 0.0
    %198 = vmatpush1.msra.mxu0 0.0
    %199 = vmatprep.subr.mxu0 0.0
    %200 = vmatpush1.msra.mxu0 0.0
    %201 = vmatprep.subr.mxu0 0.0
    %202 = vmatpush1.msra.mxu0 0.0
    %203 = vmatprep.subr.mxu0 0.0
    %204 = vmatpush1.msra.mxu0 0.0
    %205 = vmatprep.subr.mxu0 0.0
    %206 = vmatpush1.msra.mxu0 0.0
    %207 = vmatprep.subr.mxu0 0.0
    %208 = vmatpush1.msra.mxu0 0.0
    %209 = vmatprep.subr.mxu0 0.0
    %210 = vmatpush1.msra.mxu0 0.0
    %211 = vmatprep.subr.mxu0 0.0
    %212 = vmatpush1.msra.mxu0 0.0
    %213 = vmatprep.subr.mxu0 0.0
    %214 = vmatpush1.msra.mxu0 0.0
    %215 = vmatprep.subr.mxu0 0.0
    %216 = vmatpush1.msra.mxu0 0.0
    %217 = vmatprep.subr.mxu0 0.0
    %218 = vmatpush1.msra.mxu0 0.0
    %219 = vmatprep.subr.mxu0 0.0
    %220 = vmatpush1.msra.mxu0 0.0
    %221 = vmatprep.subr.mxu0 0.0
    %222 = vmatpush1.msra.mxu0 0.0
    %223 = vmatprep.subr.mxu0 0.0
    %224 = vmatpush1.msra.mxu0 0.0
    %225 = vmatprep.subr.mxu0 0.0
    %226 = vmatpush1.msra.mxu0 0.0
    %227 = vmatprep.subr.mxu0 0.0
    %228 = vmatpush1.msra.mxu0 0.0
    %229 = vmatprep.subr.mxu0 0.0
    %230 = vmatpush1.msra.mxu0 0.0
    %231 = vmatprep.subr.mxu0 0.0
    %232 = vmatpush1.msra.mxu0 0.0
    %233 = vmatprep.mubr.f32.mxu0 0.0
    %234 = vmatmul.mubr.f32.gmra.mrb[0].mxu0 %v160
    %v235 = vpop.f32.mrb[0].mxu0
    %v236 = vadd.f32 %v151, %v235
    %v237 = vpop.f32.mrb[0].mxu0
    %238 = vmatprep.mubr.f32.mxu0 0.0
    %239 = vmatmul.mubr.f32.gmra.mrb[0].mxu0 %v163
    %v240 = vpop.f32.mrb[0].mxu0
    %v241 = vadd.f32 %v156, %v240
    %v242 = vpop.f32.mrb[0].mxu0
    %243 = vdwg.mxu0
    %v244 = vtanh.pop %v236
    %v245 = vtanh.pop %v241
    %v246 = vld [vmem:[#allocation12] sm:$0x1]
    %v247 = vld [vmem:[#allocation2] sm:$0x1]
    %249 = vset.pattern.permute.xlu0 0
    %250 = vperm.xlu0 %249, %v247
    %v251 = vpop.permute.xlu0 %250
    %v253 = vlaneseq
    %v254 = vshrl.u32 %v253, 7
    %v255 = vsub.s32 0, %v254
    %v256 = vrot.slane %v251, %v255
    %v258 = vsel %vm158, %v246, 0
    %v261 = vsel %vm165, %v245, 0
    %263 = vmatprep.subr.mxu0 0.0
    %264 = vmatpush1.msra.mxu0 %v244
    %265 = vmatprep.subr.mxu0 0.0
    %266 = vmatpush1.msra.mxu0 %v261
    %267 = vmatprep.subr.mxu0 0.0
    %268 = vmatpush1.msra.mxu0 0.0
    %269 = vmatprep.subr.mxu0 0.0
    %270 = vmatpush1.msra.mxu0 0.0
    %271 = vmatprep.subr.mxu0 0.0
    %272 = vmatpush1.msra.mxu0 0.0
    %273 = vmatprep.subr.mxu0 0.0
    %274 = vmatpush1.msra.mxu0 0.0
    %275 = vmatprep.subr.mxu0 0.0
    %276 = vmatpush1.msra.mxu0 0.0
    %277 = vmatprep.subr.mxu0 0.0
    %278 = vmatpush1.msra.mxu0 0.0
    %279 = vmatprep.subr.mxu0 0.0
    %280 = vmatpush1.msra.mxu0 0.0
    %281 = vmatprep.subr.mxu0 0.0
    %282 = vmatpush1.msra.mxu0 0.0
    %283 = vmatprep.subr.mxu0 0.0
    %284 = vmatpush1.msra.mxu0 0.0
    %285 = vmatprep.subr.mxu0 0.0
    %286 = vmatpush1.msra.mxu0 0.0
    %287 = vmatprep.subr.mxu0 0.0
    %288 = vmatpush1.msra.mxu0 0.0
    %289 = vmatprep.subr.mxu0 0.0
    %290 = vmatpush1.msra.mxu0 0.0
    %291 = vmatprep.subr.mxu0 0.0
    %292 = vmatpush1.msra.mxu0 0.0
    %293 = vmatprep.subr.mxu0 0.0
    %294 = vmatpush1.msra.mxu0 0.0
    %295 = vmatprep.subr.mxu0 0.0
    %296 = vmatpush1.msra.mxu0 0.0
    %297 = vmatprep.subr.mxu0 0.0
    %298 = vmatpush1.msra.mxu0 0.0
    %299 = vmatprep.subr.mxu0 0.0
    %300 = vmatpush1.msra.mxu0 0.0
    %301 = vmatprep.subr.mxu0 0.0
    %302 = vmatpush1.msra.mxu0 0.0
    %303 = vmatprep.subr.mxu0 0.0
    %304 = vmatpush1.msra.mxu0 0.0
    %305 = vmatprep.subr.mxu0 0.0
    %306 = vmatpush1.msra.mxu0 0.0
    %307 = vmatprep.subr.mxu0 0.0
    %308 = vmatpush1.msra.mxu0 0.0
    %309 = vmatprep.subr.mxu0 0.0
    %310 = vmatpush1.msra.mxu0 0.0
    %311 = vmatprep.subr.mxu0 0.0
    %312 = vmatpush1.msra.mxu0 0.0
    %313 = vmatprep.subr.mxu0 0.0
    %314 = vmatpush1.msra.mxu0 0.0
    %315 = vmatprep.subr.mxu0 0.0
    %316 = vmatpush1.msra.mxu0 0.0
    %317 = vmatprep.subr.mxu0 0.0
    %318 = vmatpush1.msra.mxu0 0.0
    %319 = vmatprep.subr.mxu0 0.0
    %320 = vmatpush1.msra.mxu0 0.0
    %321 = vmatprep.subr.mxu0 0.0
    %322 = vmatpush1.msra.mxu0 0.0
    %323 = vmatprep.subr.mxu0 0.0
    %324 = vmatpush1.msra.mxu0 0.0
    %325 = vmatprep.subr.mxu0 0.0
    %326 = vmatpush1.msra.mxu0 0.0
    %327 = vmatprep.mubr.f32.mxu0 0.0
    %328 = vmatmul.mubr.f32.gmra.mrb[0].mxu0 %v258
    %v329 = vpop.f32.mrb[0].mxu0
    %v330 = vadd.f32 %v256, %v329
    %v331 = vpop.f32.mrb[0].mxu0
    %332 = vdwg.mxu0
    %333 = vst [vmem:[#allocation14] sm:$0x1] %v330
    // Predicated region
    $region54: #{regression_forward.1} parent=1 // pred_check
      _
    $region55: #{regression_forward.1} parent=1 // pred_check_branch
      %335 = sbr.rel (0) target = $region57
    $region56: #{regression_forward.1} parent=1 // pred_region
      %s337 = ssub.s32 16, 16
      %338 = vsyncadd [#allocation5], %s337
      %s340 = sshll.u32 [#allocation14], 4
      %s341 = int_to_ptr.vmem [resolvable:$true] %s340
      %343 = dma.vmem_to_hbm [thread:$0]  %s341, 16, %s7, [#allocation5]
    $region57: #{regression_forward.1} parent=1 // pred_fallthru
      _
    // Predicated region
    $region58: #{regression_forward.1} parent=1 // pred_check
      _
    $region59: #{regression_forward.1} parent=1 // pred_check_branch
      %345 = sbr.rel (0) target = $region61
    $region60: #{regression_forward.1} parent=1 // pred_region
      %346 = dma.done [#allocation5], 16
    $region61: #{regression_forward.1} parent=1 // pred_fallthru
      _
    %347 = vsyncpa [#allocation4], 1
    %348 = vsyncpa [#allocation7], 1
    %349 = vsyncpa [#allocation10], 1
    %350 = vsyncpa [#allocation13], 1
    %351 = vsyncpa [#allocation5], 1

</llo_original>
